<compile_context>
chip_gen: v7x
topology: tpu7x:2x2x1
jax: 0.10.0
libtpu: 0.0.40
codegen_flags: <defaults>
</compile_context>

<pallas_src>
import functools

import jax
import jax.numpy as jnp
from jax.experimental import pallas as pl
from jax.experimental.pallas import tpu as pltpu


def _round_up(x, m):
    return (x + m - 1) // m * m


def _mlp_kernel(x_ref,
                w1_ref, b1_ref,
                w2_ref, b2_ref,
                w3_ref, b3_ref,
                w4_ref, b4_ref,
                o_ref, *, compute_dtype):
    cd = compute_dtype
    # Layer 1: Linear + ReLU   (Dropout is identity in eval mode)
    h = jnp.dot(x_ref[...].astype(cd), w1_ref[...].astype(cd),
                preferred_element_type=jnp.float32)
    h = jnp.maximum(h + b1_ref[...], 0.0)
    # Layer 2: Linear + ReLU
    h = jnp.dot(h.astype(cd), w2_ref[...].astype(cd),
                preferred_element_type=jnp.float32)
    h = jnp.maximum(h + b2_ref[...], 0.0)
    # Layer 3: Linear + ReLU
    h = jnp.dot(h.astype(cd), w3_ref[...].astype(cd),
                preferred_element_type=jnp.float32)
    h = jnp.maximum(h + b3_ref[...], 0.0)
    # Layer 4: Linear + Sigmoid (exp and reciprocal both land on the EUP slot)
    h = jnp.dot(h.astype(cd), w4_ref[...].astype(cd),
                preferred_element_type=jnp.float32)
    h = h + b4_ref[...]
    o_ref[...] = pl.reciprocal(1.0 + jnp.exp(-h), approx=True).astype(o_ref.dtype)


@functools.partial(jax.jit, static_argnames=("tb", "compute_dtype"))
def mlp_forward(x, params, *, tb=128, compute_dtype=jnp.float32):
    """x: (B, lookback*features) float32. params: dict of (in,out) weights, (1,out) biases.

    tb: batch tile (multiple of 8; 128-1024 recommended).
    compute_dtype: matmul input dtype (jnp.bfloat16 on v6e/v7x for 2x MXU throughput;
                   accumulation stays f32 either way).
    """
    B, K = x.shape
    H = params["w1"].shape[1]
    horizon = params["w4"].shape[1]

    # Lane-dense output slab: pad the final layer to a multiple of 128 output lanes
    # so the output stores are unmasked; slice the real horizon back out afterwards.
    n_out = _round_up(max(horizon, 128), 128)
    w4 = jnp.pad(params["w4"], ((0, 0), (0, n_out - horizon)))
    b4 = jnp.pad(params["b4"], ((0, 0), (0, n_out - horizon)))

    # Pad batch so the grid tiles it exactly; padded rows are sliced off below.
    Bp = _round_up(B, tb)
    if Bp != B:
        x = jnp.pad(x, ((0, Bp - B), (0, 0)))

    const = lambda i: (0, 0)  # weights/biases: resident across the whole grid
    in_specs = [
        pl.BlockSpec((tb, K), lambda i: (i, 0)),
        pl.BlockSpec(params["w1"].shape, const),
        pl.BlockSpec(params["b1"].shape, const),
        pl.BlockSpec(params["w2"].shape, const),
        pl.BlockSpec(params["b2"].shape, const),
        pl.BlockSpec(params["w3"].shape, const),
        pl.BlockSpec(params["b3"].shape, const),
        pl.BlockSpec(w4.shape, const),
        pl.BlockSpec(b4.shape, const),
    ]
    out_spec = pl.BlockSpec((tb, n_out), lambda i: (i, 0))

    flops = 2 * Bp * (K * H + H * H + H * H + H * n_out)
    bytes_accessed = 4 * (Bp * K + K * H + 2 * H * H + H * n_out
                          + 3 * H + n_out + Bp * n_out)
    cost = pl.CostEstimate(flops=flops,
                           transcendentals=Bp * n_out,
                           bytes_accessed=bytes_accessed)

    out = pl.pallas_call(
        functools.partial(_mlp_kernel, compute_dtype=compute_dtype),
        out_shape=jax.ShapeDtypeStruct((Bp, n_out), jnp.float32),
        grid=(Bp // tb,),
        in_specs=in_specs,
        out_specs=out_spec,
        compiler_params=pltpu.CompilerParams(
            dimension_semantics=("parallel",)),  # shards batch across v7x's 2 TCs
        cost_estimate=cost,
    )(x, params["w1"], params["b1"], params["w2"], params["b2"],
      params["w3"], params["b3"], w4, b4)

    return out[:B, :horizon]


def init_params(key, lookback, features, horizon, n_hidden):
    """Deterministic init mirroring torch.nn.Linear default (uniform ±1/sqrt(fan_in)).
    Weights stored transposed as (in, out); biases as (1, out) for TPU-friendly 2D."""
    dims = [(lookback * features, n_hidden),
            (n_hidden, n_hidden),
            (n_hidden, n_hidden),
            (n_hidden, horizon)]
    params = {}
    for i, (fan_in, fan_out) in enumerate(dims, start=1):
        key, kw, kb = jax.random.split(key, 3)
        bound = 1.0 / (fan_in ** 0.5)
        params[f"w{i}"] = jax.random.uniform(
            kw, (fan_in, fan_out), jnp.float32, minval=-bound, maxval=bound)
        params[f"b{i}"] = jax.random.uniform(
            kb, (1, fan_out), jnp.float32, minval=-bound, maxval=bound)
    return params


def mlp_reference(x, params):
    """Pure-JAX f32 reference for correctness check."""
    h = jnp.maximum(x @ params["w1"] + params["b1"], 0.0)
    h = jnp.maximum(h @ params["w2"] + params["b2"], 0.0)
    h = jnp.maximum(h @ params["w3"] + params["b3"], 0.0)
    return jax.nn.sigmoid(h @ params["w4"] + params["b4"])


if __name__ == "__main__":
    # Shapes consistent with the module's forward (x flattened to lookback*features).
    lookback, features, horizon, n_hidden = 8, 4, 16, 64
    batch = 200  # deliberately not a tile multiple: exercises batch padding + grid of 2

    key = jax.random.PRNGKey(0)
    key, kx = jax.random.split(key)
    x = jax.random.normal(kx, (batch, lookback * features), jnp.float32)
    params = init_params(key, lookback, features, horizon, n_hidden)

    ref = mlp_reference(x, params)

    # f32 matmul-input path (exact up to the EUP approx reciprocal in the sigmoid).
    out = jax.block_until_ready(mlp_forward(x, params, tb=128,
                                            compute_dtype=jnp.float32))
    assert out.shape == (batch, horizon), out.shape
    assert jnp.allclose(out, ref, atol=5e-3), "f32 path mismatch vs reference"

    # bf16 matmul-input path (v6e/v7x throughput mode), f32 accumulation.
    out_bf16 = jax.block_until_ready(mlp_forward(x, params, tb=128,
                                                 compute_dtype=jnp.bfloat16))
    assert out_bf16.shape == (batch, horizon), out_bf16.shape
    assert jnp.allclose(out_bf16, ref, atol=3e-2), "bf16 path mismatch vs reference"

    print("KERNEL_OK")
</pallas_src>

<mosaic_0001>
module attributes {stable_mosaic.version = 11 : i64} {
  func.func @_mlp_kernel(%arg0: i32, %arg1: memref<128x32xf32, #tpu.memory_space<vmem>>, %arg2: memref<32x64xf32, #tpu.memory_space<vmem>>, %arg3: memref<1x64xf32, #tpu.memory_space<vmem>>, %arg4: memref<64x64xf32, #tpu.memory_space<vmem>>, %arg5: memref<1x64xf32, #tpu.memory_space<vmem>>, %arg6: memref<64x64xf32, #tpu.memory_space<vmem>>, %arg7: memref<1x64xf32, #tpu.memory_space<vmem>>, %arg8: memref<64x128xf32, #tpu.memory_space<vmem>>, %arg9: memref<1x128xf32, #tpu.memory_space<vmem>>, %arg10: memref<128x128xf32, #tpu.memory_space<vmem>>) attributes {dimension_semantics = [#tpu.dimension_semantics<parallel>], iteration_bounds = array<i64: 2>, scalar_prefetch = 0 : i64, scratch_operands = 0 : i64, tpu.core_type = #tpu.core_type<tc>, window_params = [{transform_indices = @transform_0, window_bounds = array<i64: 128, 32>}, {pipeline_mode = #tpu.pipeline_mode<synchronous>, transform_indices = @transform_1, window_bounds = array<i64: 32, 64>}, {pipeline_mode = #tpu.pipeline_mode<synchronous>, transform_indices = @transform_2, window_bounds = array<i64: 1, 64>}, {pipeline_mode = #tpu.pipeline_mode<synchronous>, transform_indices = @transform_3, window_bounds = array<i64: 64, 64>}, {pipeline_mode = #tpu.pipeline_mode<synchronous>, transform_indices = @transform_4, window_bounds = array<i64: 1, 64>}, {pipeline_mode = #tpu.pipeline_mode<synchronous>, transform_indices = @transform_5, window_bounds = array<i64: 64, 64>}, {pipeline_mode = #tpu.pipeline_mode<synchronous>, transform_indices = @transform_6, window_bounds = array<i64: 1, 64>}, {pipeline_mode = #tpu.pipeline_mode<synchronous>, transform_indices = @transform_7, window_bounds = array<i64: 64, 128>}, {pipeline_mode = #tpu.pipeline_mode<synchronous>, transform_indices = @transform_8, window_bounds = array<i64: 1, 128>}, {transform_indices = @transform_9, window_bounds = array<i64: 128, 128>}]} {
    %c0 = arith.constant 0 : index
    %c0_0 = arith.constant 0 : index
    %0 = vector.load %arg1[%c0, %c0_0] : memref<128x32xf32, #tpu.memory_space<vmem>>, vector<128x32xf32>
    %c0_1 = arith.constant 0 : index
    %c0_2 = arith.constant 0 : index
    %1 = vector.load %arg2[%c0_1, %c0_2] : memref<32x64xf32, #tpu.memory_space<vmem>>, vector<32x64xf32>
    %cst = arith.constant dense<0.000000e+00> : vector<128x64xf32>
    %2 = tpu.matmul %0, %1, %cst {dimension_numbers = #tpu.dot_dimension_numbers<[1], [0], [0], [1], [0, 0, 1, 1], [], []>} : vector<128x32xf32>, vector<32x64xf32>, vector<128x64xf32> -> vector<128x64xf32>
    %c0_3 = arith.constant 0 : index
    %c0_4 = arith.constant 0 : index
    %3 = vector.load %arg3[%c0_3, %c0_4] : memref<1x64xf32, #tpu.memory_space<vmem>>, vector<1x64xf32>
    %4 = vector.broadcast %3 : vector<1x64xf32> to vector<128x64xf32>
    %5 = arith.addf %2, %4 : vector<128x64xf32>
    %cst_5 = arith.constant 0.000000e+00 : f32
    %6 = vector.broadcast %cst_5 : f32 to vector<128x64xf32>
    %7 = arith.maximumf %5, %6 : vector<128x64xf32>
    %c0_6 = arith.constant 0 : index
    %c0_7 = arith.constant 0 : index
    %8 = vector.load %arg4[%c0_6, %c0_7] : memref<64x64xf32, #tpu.memory_space<vmem>>, vector<64x64xf32>
    %cst_8 = arith.constant dense<0.000000e+00> : vector<128x64xf32>
    %9 = tpu.matmul %7, %8, %cst_8 {dimension_numbers = #tpu.dot_dimension_numbers<[1], [0], [0], [1], [0, 0, 1, 1], [], []>} : vector<128x64xf32>, vector<64x64xf32>, vector<128x64xf32> -> vector<128x64xf32>
    %c0_9 = arith.constant 0 : index
    %c0_10 = arith.constant 0 : index
    %10 = vector.load %arg5[%c0_9, %c0_10] : memref<1x64xf32, #tpu.memory_space<vmem>>, vector<1x64xf32>
    %11 = vector.broadcast %10 : vector<1x64xf32> to vector<128x64xf32>
    %12 = arith.addf %9, %11 : vector<128x64xf32>
    %cst_11 = arith.constant 0.000000e+00 : f32
    %13 = vector.broadcast %cst_11 : f32 to vector<128x64xf32>
    %14 = arith.maximumf %12, %13 : vector<128x64xf32>
    %c0_12 = arith.constant 0 : index
    %c0_13 = arith.constant 0 : index
    %15 = vector.load %arg6[%c0_12, %c0_13] : memref<64x64xf32, #tpu.memory_space<vmem>>, vector<64x64xf32>
    %cst_14 = arith.constant dense<0.000000e+00> : vector<128x64xf32>
    %16 = tpu.matmul %14, %15, %cst_14 {dimension_numbers = #tpu.dot_dimension_numbers<[1], [0], [0], [1], [0, 0, 1, 1], [], []>} : vector<128x64xf32>, vector<64x64xf32>, vector<128x64xf32> -> vector<128x64xf32>
    %c0_15 = arith.constant 0 : index
    %c0_16 = arith.constant 0 : index
    %17 = vector.load %arg7[%c0_15, %c0_16] : memref<1x64xf32, #tpu.memory_space<vmem>>, vector<1x64xf32>
    %18 = vector.broadcast %17 : vector<1x64xf32> to vector<128x64xf32>
    %19 = arith.addf %16, %18 : vector<128x64xf32>
    %cst_17 = arith.constant 0.000000e+00 : f32
    %20 = vector.broadcast %cst_17 : f32 to vector<128x64xf32>
    %21 = arith.maximumf %19, %20 : vector<128x64xf32>
    %c0_18 = arith.constant 0 : index
    %c0_19 = arith.constant 0 : index
    %22 = vector.load %arg8[%c0_18, %c0_19] : memref<64x128xf32, #tpu.memory_space<vmem>>, vector<64x128xf32>
    %cst_20 = arith.constant dense<0.000000e+00> : vector<128x128xf32>
    %23 = tpu.matmul %21, %22, %cst_20 {dimension_numbers = #tpu.dot_dimension_numbers<[1], [0], [0], [1], [0, 0, 1, 1], [], []>} : vector<128x64xf32>, vector<64x128xf32>, vector<128x128xf32> -> vector<128x128xf32>
    %c0_21 = arith.constant 0 : index
    %c0_22 = arith.constant 0 : index
    %24 = vector.load %arg9[%c0_21, %c0_22] : memref<1x128xf32, #tpu.memory_space<vmem>>, vector<1x128xf32>
    %25 = vector.broadcast %24 : vector<1x128xf32> to vector<128x128xf32>
    %26 = arith.addf %23, %25 : vector<128x128xf32>
    %cst_23 = arith.constant 0.000000e+00 : f32
    %27 = vector.broadcast %cst_23 : f32 to vector<128x128xf32>
    %28 = arith.subf %27, %26 : vector<128x128xf32>
    %29 = math.exp %28 : vector<128x128xf32>
    %cst_24 = arith.constant 1.000000e+00 : f32
    %30 = vector.broadcast %cst_24 : f32 to vector<128x128xf32>
    %31 = arith.addf %30, %29 : vector<128x128xf32>
    %32 = tpu.reciprocal %31 {approx = true} : vector<128x128xf32> -> vector<128x128xf32>
    %c0_25 = arith.constant 0 : index
    %c0_26 = arith.constant 0 : index
    %33 = vector.load %arg10[%c0_25, %c0_26] : memref<128x128xf32, #tpu.memory_space<vmem>>, vector<128x128xf32>
    tpu.vector_store %arg10[%c0_25, %c0_26], %32 {strides = array<i32>} : memref<128x128xf32, #tpu.memory_space<vmem>>, vector<128x128xf32>,
    return
  }
  func.func @transform_0(%arg0: i32) -> (i32, i32) {
    %c0_i32 = arith.constant 0 : i32
    %c0_i32_0 = arith.constant 0 : i32
    return %arg0, %c0_i32 : i32, i32
  }
  func.func @transform_1(%arg0: i32) -> (i32, i32) {
    %c0_i32 = arith.constant 0 : i32
    %c0_i32_0 = arith.constant 0 : i32
    %c0_i32_1 = arith.constant 0 : i32
    return %c0_i32, %c0_i32_0 : i32, i32
  }
  func.func @transform_2(%arg0: i32) -> (i32, i32) {
    %c0_i32 = arith.constant 0 : i32
    %c0_i32_0 = arith.constant 0 : i32
    %c0_i32_1 = arith.constant 0 : i32
    return %c0_i32, %c0_i32_0 : i32, i32
  }
  func.func @transform_3(%arg0: i32) -> (i32, i32) {
    %c0_i32 = arith.constant 0 : i32
    %c0_i32_0 = arith.constant 0 : i32
    %c0_i32_1 = arith.constant 0 : i32
    return %c0_i32, %c0_i32_0 : i32, i32
  }
  func.func @transform_4(%arg0: i32) -> (i32, i32) {
    %c0_i32 = arith.constant 0 : i32
    %c0_i32_0 = arith.constant 0 : i32
    %c0_i32_1 = arith.constant 0 : i32
    return %c0_i32, %c0_i32_0 : i32, i32
  }
  func.func @transform_5(%arg0: i32) -> (i32, i32) {
    %c0_i32 = arith.constant 0 : i32
    %c0_i32_0 = arith.constant 0 : i32
    %c0_i32_1 = arith.constant 0 : i32
    return %c0_i32, %c0_i32_0 : i32, i32
  }
  func.func @transform_6(%arg0: i32) -> (i32, i32) {
    %c0_i32 = arith.constant 0 : i32
    %c0_i32_0 = arith.constant 0 : i32
    %c0_i32_1 = arith.constant 0 : i32
    return %c0_i32, %c0_i32_0 : i32, i32
  }
  func.func @transform_7(%arg0: i32) -> (i32, i32) {
    %c0_i32 = arith.constant 0 : i32
    %c0_i32_0 = arith.constant 0 : i32
    %c0_i32_1 = arith.constant 0 : i32
    return %c0_i32, %c0_i32_0 : i32, i32
  }
  func.func @transform_8(%arg0: i32) -> (i32, i32) {
    %c0_i32 = arith.constant 0 : i32
    %c0_i32_0 = arith.constant 0 : i32
    %c0_i32_1 = arith.constant 0 : i32
    return %c0_i32, %c0_i32_0 : i32, i32
  }
  func.func @transform_9(%arg0: i32) -> (i32, i32) {
    %c0_i32 = arith.constant 0 : i32
    %c0_i32_0 = arith.constant 0 : i32
    return %arg0, %c0_i32 : i32, i32
  }
}

</mosaic_0001>

<llo_original>
// kernel: mlp_forward.1
$region0: #{mlp_forward.1}
  #allocation0 [shape = 'u32[]', space=smem, size = 0x4, offset = 0x4, fixed_abs, tag = 'smem constant byte address 0x4 - core index']
  #allocation1 [shape = 'u32[144,128]{1,0:T(1,128)}', space=vmem, size = 0x12000, scoped, tag = 'internal scratch']
  %s0 = inlined_call_operand.vmem [shape: f32[256,32], index: 0, kind: input, shape index: {}]
  %s1 = inlined_call_operand.vmem [shape: f32[32,64], index: 1, kind: input, shape index: {}]
  %s2 = inlined_call_operand.vmem [shape: f32[1,64], index: 2, kind: input, shape index: {}]
  %s3 = inlined_call_operand.vmem [shape: f32[64,64], index: 3, kind: input, shape index: {}]
  %s4 = inlined_call_operand.vmem [shape: f32[1,64], index: 4, kind: input, shape index: {}]
  %s5 = inlined_call_operand.vmem [shape: f32[64,64], index: 5, kind: input, shape index: {}]
  %s6 = inlined_call_operand.vmem [shape: f32[1,64], index: 6, kind: input, shape index: {}]
  %s7 = inlined_call_operand.vmem [shape: f32[64,128], index: 7, kind: input, shape index: {}]
  %s8 = inlined_call_operand.vmem [shape: f32[1,128], index: 8, kind: input, shape index: {}]
  %s9 = inlined_call_operand.vmem [shape: f32[256,128], index: 9, kind: output, shape index: {}]
  %s10 = sld [smem:[#allocation0]]
  $region69: #{mlp_forward.1} parent=0
    _
  %s12 = ssub.s32 1, %s10
  %s13 = scalar_select 0, %s12, %s10
  loop: start=0, step=1, limit=4
  $region2: #{mlp_forward.1} parent=0 // loop_pre_header
    _
  $region3: #{mlp_forward.1} parent=0 // loop_header
    %s15 = sphi 0, %s19
    %p16 = scmp.ge.s32.totalorder %s15, 4
    %s25 = sphi 0, %s27
    %s28 = sphi 0, %s25
    %s29 = sphi 0, %s28
    %s45 = sphi 0, %s29
    %s49 = sphi 0, %s49
    %s51 = sphi 0, %s49
    %s52 = sphi 0, %s51
    %s66 = sphi 0, %s52
    %s70 = sphi 0, %s70
    %s72 = sphi 0, %s70
    %s73 = sphi 0, %s72
    %s87 = sphi 0, %s73
    %s91 = sphi 0, %s91
    %s93 = sphi 0, %s91
    %s94 = sphi 0, %s93
    %s108 = sphi 0, %s94
    %s112 = sphi 0, %s112
    %s114 = sphi 0, %s112
    %s115 = sphi 0, %s114
    %s129 = sphi 0, %s115
    %s133 = sphi 0, %s133
    %s135 = sphi 0, %s133
    %s136 = sphi 0, %s135
    %s150 = sphi 0, %s136
    %s154 = sphi 0, %s154
    %s156 = sphi 0, %s154
    %s157 = sphi 0, %s156
    %s171 = sphi 0, %s157
    %s175 = sphi 0, %s175
    %s177 = sphi 0, %s175
    %s178 = sphi 0, %s177
    %s192 = sphi 0, %s178
    %s196 = sphi 0, %s196
    %s198 = sphi 0, %s196
    %s199 = sphi 0, %s198
    %s213 = sphi 0, %s199
    %s219 = sphi 0, %s221
    %s222 = sphi 0, %s219
    %s223 = sphi 0, %s222
    %s239 = sphi 0, %s223
  $region4: #{mlp_forward.1} parent=0 // loop_header_branch
    %18 = sbr.rel (%p16) target = $region8
  $region5: #{mlp_forward.1} parent=0 // loop_body
    %s20 = ssub.s32 %s15, 1
    %s21 = ssub.s32 %s15, 2
    %s22 = sadd.s32 %s15, 1
    %s23 = ssub.s32 %s15, %s22
    %p24 = scmp.eq.s32.totalorder %s23, 0
    %s26 = sadd.s32 %s25, 1
    %s27 = scalar_select %p24, %s25, %s26
    %p30 = pneg %p24
    %p31 = scmp.eq.s32.totalorder %s15, 1
    %p32 = por %p30, %p31
    %p33 = scmp.ne.s32.totalorder %s25, %s28
    %p34 = scmp.eq.s32.totalorder %s15, 0
    %p35 = por %p33, %p34
    %p36 = scmp.ne.s32.totalorder %s25, %s28
    %p37 = scmp.eq.s32.totalorder %s20, 1
    %p38 = por %p36, %p37
    %p39 = scmp.ne.s32.totalorder %s28, %s29
    %p40 = scmp.eq.s32.totalorder %s20, 0
    %p41 = por %p39, %p40
    %p42 = scmp.ne.s32.totalorder %s28, %s29
    %p43 = scmp.eq.s32.totalorder %s21, 1
    %p44 = por %p42, %p43
    %p46 = scmp.ne.s32.totalorder %s29, %s45
    %p47 = scmp.eq.s32.totalorder %s21, 0
    %p48 = por %p46, %p47
    %s50 = sadd.s32 %s49, 1
    %p53 = scmp.eq.s32.totalorder %s15, 1
    %p54 = scmp.ne.s32.totalorder %s49, %s51
    %p55 = scmp.eq.s32.totalorder %s15, 0
    %p56 = por %p54, %p55
    %p57 = scmp.ne.s32.totalorder %s49, %s51
    %p58 = scmp.eq.s32.totalorder %s20, 1
    %p59 = por %p57, %p58
    %p60 = scmp.ne.s32.totalorder %s51, %s52
    %p61 = scmp.eq.s32.totalorder %s20, 0
    %p62 = por %p60, %p61
    %p63 = scmp.ne.s32.totalorder %s51, %s52
    %p64 = scmp.eq.s32.totalorder %s21, 1
    %p65 = por %p63, %p64
    %p67 = scmp.ne.s32.totalorder %s52, %s66
    %p68 = scmp.eq.s32.totalorder %s21, 0
    %p69 = por %p67, %p68
    %s71 = sadd.s32 %s70, 1
    %p74 = scmp.eq.s32.totalorder %s15, 1
    %p75 = scmp.ne.s32.totalorder %s70, %s72
    %p76 = scmp.eq.s32.totalorder %s15, 0
    %p77 = por %p75, %p76
    %p78 = scmp.ne.s32.totalorder %s70, %s72
    %p79 = scmp.eq.s32.totalorder %s20, 1
    %p80 = por %p78, %p79
    %p81 = scmp.ne.s32.totalorder %s72, %s73
    %p82 = scmp.eq.s32.totalorder %s20, 0
    %p83 = por %p81, %p82
    %p84 = scmp.ne.s32.totalorder %s72, %s73
    %p85 = scmp.eq.s32.totalorder %s21, 1
    %p86 = por %p84, %p85
    %p88 = scmp.ne.s32.totalorder %s73, %s87
    %p89 = scmp.eq.s32.totalorder %s21, 0
    %p90 = por %p88, %p89
    %s92 = sadd.s32 %s91, 1
    %p95 = scmp.eq.s32.totalorder %s15, 1
    %p96 = scmp.ne.s32.totalorder %s91, %s93
    %p97 = scmp.eq.s32.totalorder %s15, 0
    %p98 = por %p96, %p97
    %p99 = scmp.ne.s32.totalorder %s91, %s93
    %p100 = scmp.eq.s32.totalorder %s20, 1
    %p101 = por %p99, %p100
    %p102 = scmp.ne.s32.totalorder %s93, %s94
    %p103 = scmp.eq.s32.totalorder %s20, 0
    %p104 = por %p102, %p103
    %p105 = scmp.ne.s32.totalorder %s93, %s94
    %p106 = scmp.eq.s32.totalorder %s21, 1
    %p107 = por %p105, %p106
    %p109 = scmp.ne.s32.totalorder %s94, %s108
    %p110 = scmp.eq.s32.totalorder %s21, 0
    %p111 = por %p109, %p110
    %s113 = sadd.s32 %s112, 1
    %p116 = scmp.eq.s32.totalorder %s15, 1
    %p117 = scmp.ne.s32.totalorder %s112, %s114
    %p118 = scmp.eq.s32.totalorder %s15, 0
    %p119 = por %p117, %p118
    %p120 = scmp.ne.s32.totalorder %s112, %s114
    %p121 = scmp.eq.s32.totalorder %s20, 1
    %p122 = por %p120, %p121
    %p123 = scmp.ne.s32.totalorder %s114, %s115
    %p124 = scmp.eq.s32.totalorder %s20, 0
    %p125 = por %p123, %p124
    %p126 = scmp.ne.s32.totalorder %s114, %s115
    %p127 = scmp.eq.s32.totalorder %s21, 1
    %p128 = por %p126, %p127
    %p130 = scmp.ne.s32.totalorder %s115, %s129
    %p131 = scmp.eq.s32.totalorder %s21, 0
    %p132 = por %p130, %p131
    %s134 = sadd.s32 %s133, 1
    %p137 = scmp.eq.s32.totalorder %s15, 1
    %p138 = scmp.ne.s32.totalorder %s133, %s135
    %p139 = scmp.eq.s32.totalorder %s15, 0
    %p140 = por %p138, %p139
    %p141 = scmp.ne.s32.totalorder %s133, %s135
    %p142 = scmp.eq.s32.totalorder %s20, 1
    %p143 = por %p141, %p142
    %p144 = scmp.ne.s32.totalorder %s135, %s136
    %p145 = scmp.eq.s32.totalorder %s20, 0
    %p146 = por %p144, %p145
    %p147 = scmp.ne.s32.totalorder %s135, %s136
    %p148 = scmp.eq.s32.totalorder %s21, 1
    %p149 = por %p147, %p148
    %p151 = scmp.ne.s32.totalorder %s136, %s150
    %p152 = scmp.eq.s32.totalorder %s21, 0
    %p153 = por %p151, %p152
    %s155 = sadd.s32 %s154, 1
    %p158 = scmp.eq.s32.totalorder %s15, 1
    %p159 = scmp.ne.s32.totalorder %s154, %s156
    %p160 = scmp.eq.s32.totalorder %s15, 0
    %p161 = por %p159, %p160
    %p162 = scmp.ne.s32.totalorder %s154, %s156
    %p163 = scmp.eq.s32.totalorder %s20, 1
    %p164 = por %p162, %p163
    %p165 = scmp.ne.s32.totalorder %s156, %s157
    %p166 = scmp.eq.s32.totalorder %s20, 0
    %p167 = por %p165, %p166
    %p168 = scmp.ne.s32.totalorder %s156, %s157
    %p169 = scmp.eq.s32.totalorder %s21, 1
    %p170 = por %p168, %p169
    %p172 = scmp.ne.s32.totalorder %s157, %s171
    %p173 = scmp.eq.s32.totalorder %s21, 0
    %p174 = por %p172, %p173
    %s176 = sadd.s32 %s175, 1
    %p179 = scmp.eq.s32.totalorder %s15, 1
    %p180 = scmp.ne.s32.totalorder %s175, %s177
    %p181 = scmp.eq.s32.totalorder %s15, 0
    %p182 = por %p180, %p181
    %p183 = scmp.ne.s32.totalorder %s175, %s177
    %p184 = scmp.eq.s32.totalorder %s20, 1
    %p185 = por %p183, %p184
    %p186 = scmp.ne.s32.totalorder %s177, %s178
    %p187 = scmp.eq.s32.totalorder %s20, 0
    %p188 = por %p186, %p187
    %p189 = scmp.ne.s32.totalorder %s177, %s178
    %p190 = scmp.eq.s32.totalorder %s21, 1
    %p191 = por %p189, %p190
    %p193 = scmp.ne.s32.totalorder %s178, %s192
    %p194 = scmp.eq.s32.totalorder %s21, 0
    %p195 = por %p193, %p194
    %s197 = sadd.s32 %s196, 1
    %p200 = scmp.eq.s32.totalorder %s15, 1
    %p201 = scmp.ne.s32.totalorder %s196, %s198
    %p202 = scmp.eq.s32.totalorder %s15, 0
    %p203 = por %p201, %p202
    %p204 = scmp.ne.s32.totalorder %s196, %s198
    %p205 = scmp.eq.s32.totalorder %s20, 1
    %p206 = por %p204, %p205
    %p207 = scmp.ne.s32.totalorder %s198, %s199
    %p208 = scmp.eq.s32.totalorder %s20, 0
    %p209 = por %p207, %p208
    %p210 = scmp.ne.s32.totalorder %s198, %s199
    %p211 = scmp.eq.s32.totalorder %s21, 1
    %p212 = por %p210, %p211
    %p214 = scmp.ne.s32.totalorder %s199, %s213
    %p215 = scmp.eq.s32.totalorder %s21, 0
    %p216 = por %p214, %p215
    %s217 = ssub.s32 %s15, %s22
    %p218 = scmp.eq.s32.totalorder %s217, 0
    %s220 = sadd.s32 %s219, 1
    %s221 = scalar_select %p218, %s219, %s220
    %p224 = pneg %p218
    %p225 = scmp.eq.s32.totalorder %s15, 1
    %p226 = por %p224, %p225
    %p227 = scmp.ne.s32.totalorder %s219, %s222
    %p228 = scmp.eq.s32.totalorder %s15, 0
    %p229 = por %p227, %p228
    %p230 = scmp.ne.s32.totalorder %s219, %s222
    %p231 = scmp.eq.s32.totalorder %s20, 1
    %p232 = por %p230, %p231
    %p233 = scmp.ne.s32.totalorder %s222, %s223
    %p234 = scmp.eq.s32.totalorder %s20, 0
    %p235 = por %p233, %p234
    %p236 = scmp.ne.s32.totalorder %s222, %s223
    %p237 = scmp.eq.s32.totalorder %s21, 1
    %p238 = por %p236, %p237
    %p240 = scmp.ne.s32.totalorder %s223, %s239
    %p241 = scmp.eq.s32.totalorder %s21, 0
    %p242 = por %p240, %p241
    %p243 = scmp.le.s32.totalorder 1, %s15
    %p244 = scmp.lt.s32.totalorder %s15, 3
    %p245 = pnand %p243, %p244
    %p246 = pneg %p245
    // Predicated region
    $region9: #{mlp_forward.1} parent=5 // pred_check
      _
    $region10: #{mlp_forward.1} parent=5 // pred_check_branch
      %248 = sbr.rel (%p245) target = $region12
    $region11: #{mlp_forward.1} parent=5 // pred_region
      %s249 = ssub.s32 %s15, 1
      // Predicated region
      $region13: #{mlp_forward.1} parent=11 // pred_check
        %p250 = pneg %p62
      $region14: #{mlp_forward.1} parent=11 // pred_check_branch
        %252 = sbr.rel (%p250) target = $region16
      $region15: #{mlp_forward.1} parent=11 // pred_region
        _
      $region16: #{mlp_forward.1} parent=11 // pred_fallthru
        _
      // Predicated region
      $region17: #{mlp_forward.1} parent=11 // pred_check
        %p253 = pneg %p83
      $region18: #{mlp_forward.1} parent=11 // pred_check_branch
        %255 = sbr.rel (%p253) target = $region20
      $region19: #{mlp_forward.1} parent=11 // pred_region
        _
      $region20: #{mlp_forward.1} parent=11 // pred_fallthru
        _
      // Predicated region
      $region21: #{mlp_forward.1} parent=11 // pred_check
        %p256 = pneg %p104
      $region22: #{mlp_forward.1} parent=11 // pred_check_branch
        %258 = sbr.rel (%p256) target = $region24
      $region23: #{mlp_forward.1} parent=11 // pred_region
        _
      $region24: #{mlp_forward.1} parent=11 // pred_fallthru
        _
      // Predicated region
      $region25: #{mlp_forward.1} parent=11 // pred_check
        %p259 = pneg %p125
      $region26: #{mlp_forward.1} parent=11 // pred_check_branch
        %261 = sbr.rel (%p259) target = $region28
      $region27: #{mlp_forward.1} parent=11 // pred_region
        _
      $region28: #{mlp_forward.1} parent=11 // pred_fallthru
        _
      // Predicated region
      $region29: #{mlp_forward.1} parent=11 // pred_check
        %p262 = pneg %p146
      $region30: #{mlp_forward.1} parent=11 // pred_check_branch
        %264 = sbr.rel (%p262) target = $region32
      $region31: #{mlp_forward.1} parent=11 // pred_region
        _
      $region32: #{mlp_forward.1} parent=11 // pred_fallthru
        _
      // Predicated region
      $region33: #{mlp_forward.1} parent=11 // pred_check
        %p265 = pneg %p167
      $region34: #{mlp_forward.1} parent=11 // pred_check_branch
        %267 = sbr.rel (%p265) target = $region36
      $region35: #{mlp_forward.1} parent=11 // pred_region
        _
      $region36: #{mlp_forward.1} parent=11 // pred_fallthru
        _
      // Predicated region
      $region37: #{mlp_forward.1} parent=11 // pred_check
        %p268 = pneg %p188
      $region38: #{mlp_forward.1} parent=11 // pred_check_branch
        %270 = sbr.rel (%p268) target = $region40
      $region39: #{mlp_forward.1} parent=11 // pred_region
        _
      $region40: #{mlp_forward.1} parent=11 // pred_fallthru
        _
      // Predicated region
      $region41: #{mlp_forward.1} parent=11 // pred_check
        %p271 = pneg %p209
      $region42: #{mlp_forward.1} parent=11 // pred_check_branch
        %273 = sbr.rel (%p271) target = $region44
      $region43: #{mlp_forward.1} parent=11 // pred_region
        _
      $region44: #{mlp_forward.1} parent=11 // pred_fallthru
        _
    $region12: #{mlp_forward.1} parent=5 // pred_fallthru
      _
    %p274 = scmp.lt.s32.totalorder %s15, 2
    // Predicated region
    $region45: #{mlp_forward.1} parent=5 // pred_check
      %p275 = pneg %p274
    $region46: #{mlp_forward.1} parent=5 // pred_check_branch
      %277 = sbr.rel (%p275) target = $region48
    $region47: #{mlp_forward.1} parent=5 // pred_region
      // Predicated region
      $region49: #{mlp_forward.1} parent=47 // pred_check
        %p278 = pneg %p35
      $region50: #{mlp_forward.1} parent=47 // pred_check_branch
        %280 = sbr.rel (%p278) target = $region52
      $region51: #{mlp_forward.1} parent=47 // pred_region
        %s281 = smul.u32 16, %s15
        %p282 = scmp.lt.s32.totalorder %s281, 31
        %s283 = scalar_select %p282, %s281, 31
        %s284 = smul.addr %s283, 8
        %s285 = scalar_lea.vmem %s0, %s284
        %s286 = smul.u32 16, %s15
      $region52: #{mlp_forward.1} parent=47 // pred_fallthru
        _
    $region48: #{mlp_forward.1} parent=5 // pred_fallthru
      _
    %p287 = scmp.le.s32.totalorder 1, %s15
    %p288 = scmp.lt.s32.totalorder %s15, 3
    %p289 = pnand %p287, %p288
    %p290 = pneg %p289
    // Predicated region
    $region53: #{mlp_forward.1} parent=5 // pred_check
      _
    $region54: #{mlp_forward.1} parent=5 // pred_check_branch
      %292 = sbr.rel (%p289) target = $region56
    $region55: #{mlp_forward.1} parent=5 // pred_region
      %s293 = ssub.s32 %s15, 1
      %s294 = smul.u32 16, %s20
      %p295 = scmp.lt.s32.totalorder %s294, 31
      %s296 = scalar_select %p295, %s294, 31
      %s297 = smul.addr %s296, 8
      %s298 = scalar_lea.vmem %s0, %s297
      %p299 = pneg %p41
      %p300 = pneg %p38
      %p301 = pneg %p62
      %p302 = pneg %p59
      %p303 = pneg %p83
      %p304 = pneg %p80
      %p305 = pneg %p104
      %p306 = pneg %p101
      %p307 = pneg %p125
      %p308 = pneg %p122
      %p309 = pneg %p146
      %p310 = pneg %p143
      %p311 = pneg %p167
      %p312 = pneg %p164
      %p313 = pneg %p188
      %p314 = pneg %p185
      %p315 = pneg %p209
      %p316 = pneg %p206
      %p317 = pneg %p235
      %p318 = pneg %p232
      %s319 = smul.u32 16, %s20
      %p320 = scmp.lt.s32.totalorder %s319, 31
      %s321 = scalar_select %p320, %s319, 31
      %s322 = smul.addr %s321, 8
      %s323 = scalar_lea.vmem %s9, %s322
      %s324 = smul.u32 16, %s20
      %p325 = scmp.lt.s32.totalorder %s324, 31
      %s326 = scalar_select %p325, %s324, 31
      %s327 = smul.addr %s326, 8
      %s328 = scalar_lea.vmem %s0, %s327
      %s329 = smul.u32 16, %s20
      %s330 = smul.u32 16, %s20
      %p331 = scmp.lt.s32.totalorder %s330, 31
      %s332 = scalar_select %p331, %s330, 31
      %s333 = smul.addr %s332, 8
      %s334 = scalar_lea.vmem %s9, %s333
      %s335 = smul.u32 16, %s20
      %v336 = vld [vmem:[%s328] sm:$0xff]
      %v337 = vld [vmem:[%s328 + $0x8] sm:$0xff]
      %v338 = vld [vmem:[%s328 + $0x10] sm:$0xff]
      %v339 = vld [vmem:[%s328 + $0x18] sm:$0xff]
      %v340 = vld [vmem:[%s328 + $0x20] sm:$0xff]
      %v341 = vld [vmem:[%s328 + $0x28] sm:$0xff]
      %v342 = vld [vmem:[%s328 + $0x30] sm:$0xff]
      %v343 = vld [vmem:[%s328 + $0x38] sm:$0xff]
      %v344 = vld [vmem:[%s328 + $0x40] sm:$0xff]
      %v345 = vld [vmem:[%s328 + $0x48] sm:$0xff]
      %v346 = vld [vmem:[%s328 + $0x50] sm:$0xff]
      %v347 = vld [vmem:[%s328 + $0x58] sm:$0xff]
      %v348 = vld [vmem:[%s328 + $0x60] sm:$0xff]
      %v349 = vld [vmem:[%s328 + $0x68] sm:$0xff]
      %v350 = vld [vmem:[%s328 + $0x70] sm:$0xff]
      %v351 = vld [vmem:[%s328 + $0x78] sm:$0xff]
      %v352 = vld [vmem:[%s1] sm:$0xff]
      %v353 = vld [vmem:[%s1 + $0x8] sm:$0xff]
      %v354 = vld [vmem:[%s1 + $0x10] sm:$0xff]
      %v355 = vld [vmem:[%s1 + $0x18] sm:$0xff]
      %v356 = vld [vmem:[%s2] sm:$0x1]
      %v358 = vlaneseq
      %v359 = vshrl.u32 %v358, 7
      %v360 = vsub.s32 0, %v359
      %v361 = vrot.slane %v356, %v360
      %vm363 = vcmask 261120
      %v365 = vsel %vm363, %v336, 0
      %v368 = vsel %vm363, %v337, 0
      %v371 = vsel %vm363, %v338, 0
      %v374 = vsel %vm363, %v339, 0
      %v377 = vsel %vm363, %v340, 0
      %v380 = vsel %vm363, %v341, 0
      %v383 = vsel %vm363, %v342, 0
      %v386 = vsel %vm363, %v343, 0
      %v389 = vsel %vm363, %v344, 0
      %v392 = vsel %vm363, %v345, 0
      %v395 = vsel %vm363, %v346, 0
      %v398 = vsel %vm363, %v347, 0
      %v401 = vsel %vm363, %v348, 0
      %v404 = vsel %vm363, %v349, 0
      %v407 = vsel %vm363, %v350, 0
      %v410 = vsel %vm363, %v351, 0
      %412 = vmatprep.subr.mxu0 0.0
      %413 = vmatpush1.msra.mxu0 %v352
      %414 = vmatprep.subr.mxu0 0.0
      %415 = vmatpush1.msra.mxu0 %v353
      %416 = vmatprep.subr.mxu0 0.0
      %417 = vmatpush1.msra.mxu0 %v354
      %418 = vmatprep.subr.mxu0 0.0
      %419 = vmatpush1.msra.mxu0 %v355
      %420 = vmatprep.subr.mxu0 0.0
      %421 = vmatpush1.msra.mxu0 0.0
      %422 = vmatprep.subr.mxu0 0.0
      %423 = vmatpush1.msra.mxu0 0.0
      %424 = vmatprep.subr.mxu0 0.0
      %425 = vmatpush1.msra.mxu0 0.0
      %426 = vmatprep.subr.mxu0 0.0
      %427 = vmatpush1.msra.mxu0 0.0
      %428 = vmatprep.subr.mxu0 0.0
      %429 = vmatpush1.msra.mxu0 0.0
      %430 = vmatprep.subr.mxu0 0.0
      %431 = vmatpush1.msra.mxu0 0.0
      %432 = vmatprep.subr.mxu0 0.0
      %433 = vmatpush1.msra.mxu0 0.0
      %434 = vmatprep.subr.mxu0 0.0
      %435 = vmatpush1.msra.mxu0 0.0
      %436 = vmatprep.subr.mxu0 0.0
      %437 = vmatpush1.msra.mxu0 0.0
      %438 = vmatprep.subr.mxu0 0.0
      %439 = vmatpush1.msra.mxu0 0.0
      %440 = vmatprep.subr.mxu0 0.0
      %441 = vmatpush1.msra.mxu0 0.0
      %442 = vmatprep.subr.mxu0 0.0
      %443 = vmatpush1.msra.mxu0 0.0
      %444 = vmatprep.subr.mxu0 0.0
      %445 = vmatpush1.msra.mxu0 0.0
      %446 = vmatprep.subr.mxu0 0.0
      %447 = vmatpush1.msra.mxu0 0.0
      %448 = vmatprep.subr.mxu0 0.0
      %449 = vmatpush1.msra.mxu0 0.0
      %450 = vmatprep.subr.mxu0 0.0
      %451 = vmatpush1.msra.mxu0 0.0
      %452 = vmatprep.subr.mxu0 0.0
      %453 = vmatpush1.msra.mxu0 0.0
      %454 = vmatprep.subr.mxu0 0.0
      %455 = vmatpush1.msra.mxu0 0.0
      %456 = vmatprep.subr.mxu0 0.0
      %457 = vmatpush1.msra.mxu0 0.0
      %458 = vmatprep.subr.mxu0 0.0
      %459 = vmatpush1.msra.mxu0 0.0
      %460 = vmatprep.subr.mxu0 0.0
      %461 = vmatpush1.msra.mxu0 0.0
      %462 = vmatprep.subr.mxu0 0.0
      %463 = vmatpush1.msra.mxu0 0.0
      %464 = vmatprep.subr.mxu0 0.0
      %465 = vmatpush1.msra.mxu0 0.0
      %466 = vmatprep.subr.mxu0 0.0
      %467 = vmatpush1.msra.mxu0 0.0
      %468 = vmatprep.subr.mxu0 0.0
      %469 = vmatpush1.msra.mxu0 0.0
      %470 = vmatprep.subr.mxu0 0.0
      %471 = vmatpush1.msra.mxu0 0.0
      %472 = vmatprep.subr.mxu0 0.0
      %473 = vmatpush1.msra.mxu0 0.0
      %474 = vmatprep.subr.mxu0 0.0
      %475 = vmatpush1.msra.mxu0 0.0
      %476 = vmatprep.mubr.f32.mxu0 0.0
      %477 = vmatmul.mubr.f32.gmra.mrb[0].mxu0 %v365
      %v478 = vpop.f32.mrb[0].mxu0
      %v479 = vadd.f32 %v361, %v478
      %v480 = vpop.f32.mrb[0].mxu0
      %481 = vmatprep.mubr.f32.mxu0 0.0
      %482 = vmatmul.mubr.f32.gmra.mrb[0].mxu0 %v368
      %v483 = vpop.f32.mrb[0].mxu0
      %v484 = vadd.f32 %v361, %v483
      %v485 = vpop.f32.mrb[0].mxu0
      %486 = vmatprep.mubr.f32.mxu0 0.0
      %487 = vmatmul.mubr.f32.gmra.mrb[0].mxu0 %v371
      %v488 = vpop.f32.mrb[0].mxu0
      %v489 = vadd.f32 %v361, %v488
      %v490 = vpop.f32.mrb[0].mxu0
      %491 = vmatprep.mubr.f32.mxu0 0.0
      %492 = vmatmul.mubr.f32.gmra.mrb[0].mxu0 %v374
      %v493 = vpop.f32.mrb[0].mxu0
      %v494 = vadd.f32 %v361, %v493
      %v495 = vpop.f32.mrb[0].mxu0
      %496 = vmatprep.mubr.f32.mxu0 0.0
      %497 = vmatmul.mubr.f32.gmra.mrb[0].mxu0 %v377
      %v498 = vpop.f32.mrb[0].mxu0
      %v499 = vadd.f32 %v361, %v498
      %v500 = vpop.f32.mrb[0].mxu0
      %501 = vmatprep.mubr.f32.mxu0 0.0
      %502 = vmatmul.mubr.f32.gmra.mrb[0].mxu0 %v380
      %v503 = vpop.f32.mrb[0].mxu0
      %v504 = vadd.f32 %v361, %v503
      %v505 = vpop.f32.mrb[0].mxu0
      %506 = vmatprep.mubr.f32.mxu0 0.0
      %507 = vmatmul.mubr.f32.gmra.mrb[0].mxu0 %v383
      %v508 = vpop.f32.mrb[0].mxu0
      %v509 = vadd.f32 %v361, %v508
      %v510 = vpop.f32.mrb[0].mxu0
      %511 = vmatprep.mubr.f32.mxu0 0.0
      %512 = vmatmul.mubr.f32.gmra.mrb[0].mxu0 %v386
      %v513 = vpop.f32.mrb[0].mxu0
      %v514 = vadd.f32 %v361, %v513
      %v515 = vpop.f32.mrb[0].mxu0
      %516 = vmatprep.mubr.f32.mxu0 0.0
      %517 = vmatmul.mubr.f32.gmra.mrb[0].mxu0 %v389
      %v518 = vpop.f32.mrb[0].mxu0
      %v519 = vadd.f32 %v361, %v518
      %v520 = vpop.f32.mrb[0].mxu0
      %521 = vmatprep.mubr.f32.mxu0 0.0
      %522 = vmatmul.mubr.f32.gmra.mrb[0].mxu0 %v392
      %v523 = vpop.f32.mrb[0].mxu0
      %v524 = vadd.f32 %v361, %v523
      %v525 = vpop.f32.mrb[0].mxu0
      %526 = vmatprep.mubr.f32.mxu0 0.0
      %527 = vmatmul.mubr.f32.gmra.mrb[0].mxu0 %v395
      %v528 = vpop.f32.mrb[0].mxu0
      %v529 = vadd.f32 %v361, %v528
      %v530 = vpop.f32.mrb[0].mxu0
      %531 = vmatprep.mubr.f32.mxu0 0.0
      %532 = vmatmul.mubr.f32.gmra.mrb[0].mxu0 %v398
      %v533 = vpop.f32.mrb[0].mxu0
      %v534 = vadd.f32 %v361, %v533
      %v535 = vpop.f32.mrb[0].mxu0
      %536 = vmatprep.mubr.f32.mxu0 0.0
      %537 = vmatmul.mubr.f32.gmra.mrb[0].mxu0 %v401
      %v538 = vpop.f32.mrb[0].mxu0
      %v539 = vadd.f32 %v361, %v538
      %v540 = vpop.f32.mrb[0].mxu0
      %541 = vmatprep.mubr.f32.mxu0 0.0
      %542 = vmatmul.mubr.f32.gmra.mrb[0].mxu0 %v404
      %v543 = vpop.f32.mrb[0].mxu0
      %v544 = vadd.f32 %v361, %v543
      %v545 = vpop.f32.mrb[0].mxu0
      %546 = vmatprep.mubr.f32.mxu0 0.0
      %547 = vmatmul.mubr.f32.gmra.mrb[0].mxu0 %v407
      %v548 = vpop.f32.mrb[0].mxu0
      %v549 = vadd.f32 %v361, %v548
      %v550 = vpop.f32.mrb[0].mxu0
      %551 = vmatprep.mubr.f32.mxu0 0.0
      %552 = vmatmul.mubr.f32.gmra.mrb[0].mxu0 %v410
      %v553 = vpop.f32.mrb[0].mxu0
      %v554 = vadd.f32 %v361, %v553
      %v555 = vpop.f32.mrb[0].mxu0
      %556 = vdwg.mxu0
      %v557 = vmax.f32 %v479, 0.0
      %v558 = vmax.f32 %v484, 0.0
      %v559 = vmax.f32 %v489, 0.0
      %v560 = vmax.f32 %v494, 0.0
      %v561 = vmax.f32 %v499, 0.0
      %v562 = vmax.f32 %v504, 0.0
      %v563 = vmax.f32 %v509, 0.0
      %v564 = vmax.f32 %v514, 0.0
      %v565 = vmax.f32 %v519, 0.0
      %v566 = vmax.f32 %v524, 0.0
      %v567 = vmax.f32 %v529, 0.0
      %v568 = vmax.f32 %v534, 0.0
      %v569 = vmax.f32 %v539, 0.0
      %v570 = vmax.f32 %v544, 0.0
      %v571 = vmax.f32 %v549, 0.0
      %v572 = vmax.f32 %v554, 0.0
      %v573 = vld [vmem:[%s3] sm:$0xff]
      %v574 = vld [vmem:[%s3 + $0x8] sm:$0xff]
      %v575 = vld [vmem:[%s3 + $0x10] sm:$0xff]
      %v576 = vld [vmem:[%s3 + $0x18] sm:$0xff]
      %v577 = vld [vmem:[%s3 + $0x20] sm:$0xff]
      %v578 = vld [vmem:[%s3 + $0x28] sm:$0xff]
      %v579 = vld [vmem:[%s3 + $0x30] sm:$0xff]
      %v580 = vld [vmem:[%s3 + $0x38] sm:$0xff]
      %v581 = vld [vmem:[%s4] sm:$0x1]
      %v583 = vlaneseq
      %v584 = vshrl.u32 %v583, 7
      %v585 = vsub.s32 0, %v584
      %v586 = vrot.slane %v581, %v585
      %vm588 = vcmask 523264
      %v590 = vsel %vm588, %v557, 0
      %v593 = vsel %vm588, %v558, 0
      %v596 = vsel %vm588, %v559, 0
      %v599 = vsel %vm588, %v560, 0
      %v602 = vsel %vm588, %v561, 0
      %v605 = vsel %vm588, %v562, 0
      %v608 = vsel %vm588, %v563, 0
      %v611 = vsel %vm588, %v564, 0
      %v614 = vsel %vm588, %v565, 0
      %v617 = vsel %vm588, %v566, 0
      %v620 = vsel %vm588, %v567, 0
      %v623 = vsel %vm588, %v568, 0
      %v626 = vsel %vm588, %v569, 0
      %v629 = vsel %vm588, %v570, 0
      %v632 = vsel %vm588, %v571, 0
      %v635 = vsel %vm588, %v572, 0
      %637 = vmatprep.subr.mxu0 0.0
      %638 = vmatpush1.msra.mxu0 %v573
      %639 = vmatprep.subr.mxu0 0.0
      %640 = vmatpush1.msra.mxu0 %v574
      %641 = vmatprep.subr.mxu0 0.0
      %642 = vmatpush1.msra.mxu0 %v575
      %643 = vmatprep.subr.mxu0 0.0
      %644 = vmatpush1.msra.mxu0 %v576
      %645 = vmatprep.subr.mxu0 0.0
      %646 = vmatpush1.msra.mxu0 %v577
      %647 = vmatprep.subr.mxu0 0.0
      %648 = vmatpush1.msra.mxu0 %v578
      %649 = vmatprep.subr.mxu0 0.0
      %650 = vmatpush1.msra.mxu0 %v579
      %651 = vmatprep.subr.mxu0 0.0
      %652 = vmatpush1.msra.mxu0 %v580
      %653 = vmatprep.subr.mxu0 0.0
      %654 = vmatpush1.msra.mxu0 0.0
      %655 = vmatprep.subr.mxu0 0.0
      %656 = vmatpush1.msra.mxu0 0.0
      %657 = vmatprep.subr.mxu0 0.0
      %658 = vmatpush1.msra.mxu0 0.0
      %659 = vmatprep.subr.mxu0 0.0
      %660 = vmatpush1.msra.mxu0 0.0
      %661 = vmatprep.subr.mxu0 0.0
      %662 = vmatpush1.msra.mxu0 0.0
      %663 = vmatprep.subr.mxu0 0.0
      %664 = vmatpush1.msra.mxu0 0.0
      %665 = vmatprep.subr.mxu0 0.0
      %666 = vmatpush1.msra.mxu0 0.0
      %667 = vmatprep.subr.mxu0 0.0
      %668 = vmatpush1.msra.mxu0 0.0
      %669 = vmatprep.subr.mxu0 0.0
      %670 = vmatpush1.msra.mxu0 0.0
      %671 = vmatprep.subr.mxu0 0.0
      %672 = vmatpush1.msra.mxu0 0.0
      %673 = vmatprep.subr.mxu0 0.0
      %674 = vmatpush1.msra.mxu0 0.0
      %675 = vmatprep.subr.mxu0 0.0
      %676 = vmatpush1.msra.mxu0 0.0
      %677 = vmatprep.subr.mxu0 0.0
      %678 = vmatpush1.msra.mxu0 0.0
      %679 = vmatprep.subr.mxu0 0.0
      %680 = vmatpush1.msra.mxu0 0.0
      %681 = vmatprep.subr.mxu0 0.0
      %682 = vmatpush1.msra.mxu0 0.0
      %683 = vmatprep.subr.mxu0 0.0
      %684 = vmatpush1.msra.mxu0 0.0
      %685 = vmatprep.subr.mxu0 0.0
      %686 = vmatpush1.msra.mxu0 0.0
      %687 = vmatprep.subr.mxu0 0.0
      %688 = vmatpush1.msra.mxu0 0.0
      %689 = vmatprep.subr.mxu0 0.0
      %690 = vmatpush1.msra.mxu0 0.0
      %691 = vmatprep.subr.mxu0 0.0
      %692 = vmatpush1.msra.mxu0 0.0
      %693 = vmatprep.subr.mxu0 0.0
      %694 = vmatpush1.msra.mxu0 0.0
      %695 = vmatprep.subr.mxu0 0.0
      %696 = vmatpush1.msra.mxu0 0.0
      %697 = vmatprep.subr.mxu0 0.0
      %698 = vmatpush1.msra.mxu0 0.0
      %699 = vmatprep.subr.mxu0 0.0
      %700 = vmatpush1.msra.mxu0 0.0
      %701 = vmatprep.mubr.f32.mxu0 0.0
      %702 = vmatmul.mubr.f32.gmra.mrb[0].mxu0 %v590
      %v703 = vpop.f32.mrb[0].mxu0
      %v704 = vadd.f32 %v586, %v703
      %v705 = vpop.f32.mrb[0].mxu0
      %706 = vmatprep.mubr.f32.mxu0 0.0
      %707 = vmatmul.mubr.f32.gmra.mrb[0].mxu0 %v593
      %v708 = vpop.f32.mrb[0].mxu0
      %v709 = vadd.f32 %v586, %v708
      %v710 = vpop.f32.mrb[0].mxu0
      %711 = vmatprep.mubr.f32.mxu0 0.0
      %712 = vmatmul.mubr.f32.gmra.mrb[0].mxu0 %v596
      %v713 = vpop.f32.mrb[0].mxu0
      %v714 = vadd.f32 %v586, %v713
      %v715 = vpop.f32.mrb[0].mxu0
      %716 = vmatprep.mubr.f32.mxu0 0.0
      %717 = vmatmul.mubr.f32.gmra.mrb[0].mxu0 %v599
      %v718 = vpop.f32.mrb[0].mxu0
      %v719 = vadd.f32 %v586, %v718
      %v720 = vpop.f32.mrb[0].mxu0
      %721 = vmatprep.mubr.f32.mxu0 0.0
      %722 = vmatmul.mubr.f32.gmra.mrb[0].mxu0 %v602
      %v723 = vpop.f32.mrb[0].mxu0
      %v724 = vadd.f32 %v586, %v723
      %v725 = vpop.f32.mrb[0].mxu0
      %726 = vmatprep.mubr.f32.mxu0 0.0
      %727 = vmatmul.mubr.f32.gmra.mrb[0].mxu0 %v605
      %v728 = vpop.f32.mrb[0].mxu0
      %v729 = vadd.f32 %v586, %v728
      %v730 = vpop.f32.mrb[0].mxu0
      %731 = vmatprep.mubr.f32.mxu0 0.0
      %732 = vmatmul.mubr.f32.gmra.mrb[0].mxu0 %v608
      %v733 = vpop.f32.mrb[0].mxu0
      %v734 = vadd.f32 %v586, %v733
      %v735 = vpop.f32.mrb[0].mxu0
      %736 = vmatprep.mubr.f32.mxu0 0.0
      %737 = vmatmul.mubr.f32.gmra.mrb[0].mxu0 %v611
      %v738 = vpop.f32.mrb[0].mxu0
      %v739 = vadd.f32 %v586, %v738
      %v740 = vpop.f32.mrb[0].mxu0
      %741 = vmatprep.mubr.f32.mxu0 0.0
      %742 = vmatmul.mubr.f32.gmra.mrb[0].mxu0 %v614
      %v743 = vpop.f32.mrb[0].mxu0
      %v744 = vadd.f32 %v586, %v743
      %v745 = vpop.f32.mrb[0].mxu0
      %746 = vmatprep.mubr.f32.mxu0 0.0
      %747 = vmatmul.mubr.f32.gmra.mrb[0].mxu0 %v617
      %v748 = vpop.f32.mrb[0].mxu0
      %v749 = vadd.f32 %v586, %v748
      %v750 = vpop.f32.mrb[0].mxu0
      %751 = vmatprep.mubr.f32.mxu0 0.0
      %752 = vmatmul.mubr.f32.gmra.mrb[0].mxu0 %v620
      %v753 = vpop.f32.mrb[0].mxu0
      %v754 = vadd.f32 %v586, %v753
      %v755 = vpop.f32.mrb[0].mxu0
      %756 = vmatprep.mubr.f32.mxu0 0.0
      %757 = vmatmul.mubr.f32.gmra.mrb[0].mxu0 %v623
      %v758 = vpop.f32.mrb[0].mxu0
      %v759 = vadd.f32 %v586, %v758
      %v760 = vpop.f32.mrb[0].mxu0
      %761 = vmatprep.mubr.f32.mxu0 0.0
      %762 = vmatmul.mubr.f32.gmra.mrb[0].mxu0 %v626
      %v763 = vpop.f32.mrb[0].mxu0
      %v764 = vadd.f32 %v586, %v763
      %v765 = vpop.f32.mrb[0].mxu0
      %766 = vmatprep.mubr.f32.mxu0 0.0
      %767 = vmatmul.mubr.f32.gmra.mrb[0].mxu0 %v629
      %v768 = vpop.f32.mrb[0].mxu0
      %v769 = vadd.f32 %v586, %v768
      %v770 = vpop.f32.mrb[0].mxu0
      %771 = vmatprep.mubr.f32.mxu0 0.0
      %772 = vmatmul.mubr.f32.gmra.mrb[0].mxu0 %v632
      %v773 = vpop.f32.mrb[0].mxu0
      %v774 = vadd.f32 %v586, %v773
      %v775 = vpop.f32.mrb[0].mxu0
      %776 = vmatprep.mubr.f32.mxu0 0.0
      %777 = vmatmul.mubr.f32.gmra.mrb[0].mxu0 %v635
      %v778 = vpop.f32.mrb[0].mxu0
      %v779 = vadd.f32 %v586, %v778
      %v780 = vpop.f32.mrb[0].mxu0
      %781 = vdwg.mxu0
      %v782 = vmax.f32 %v704, 0.0
      %v783 = vmax.f32 %v709, 0.0
      %v784 = vmax.f32 %v714, 0.0
      %v785 = vmax.f32 %v719, 0.0
      %v786 = vmax.f32 %v724, 0.0
      %v787 = vmax.f32 %v729, 0.0
      %v788 = vmax.f32 %v734, 0.0
      %v789 = vmax.f32 %v739, 0.0
      %v790 = vmax.f32 %v744, 0.0
      %v791 = vmax.f32 %v749, 0.0
      %v792 = vmax.f32 %v754, 0.0
      %v793 = vmax.f32 %v759, 0.0
      %v794 = vmax.f32 %v764, 0.0
      %v795 = vmax.f32 %v769, 0.0
      %v796 = vmax.f32 %v774, 0.0
      %v797 = vmax.f32 %v779, 0.0
      %v798 = vld [vmem:[%s5] sm:$0xff]
      %v799 = vld [vmem:[%s5 + $0x8] sm:$0xff]
      %v800 = vld [vmem:[%s5 + $0x10] sm:$0xff]
      %v801 = vld [vmem:[%s5 + $0x18] sm:$0xff]
      %v802 = vld [vmem:[%s5 + $0x20] sm:$0xff]
      %v803 = vld [vmem:[%s5 + $0x28] sm:$0xff]
      %v804 = vld [vmem:[%s5 + $0x30] sm:$0xff]
      %v805 = vld [vmem:[%s5 + $0x38] sm:$0xff]
      %v806 = vld [vmem:[%s6] sm:$0x1]
      %v808 = vlaneseq
      %v809 = vshrl.u32 %v808, 7
      %v810 = vsub.s32 0, %v809
      %v811 = vrot.slane %v806, %v810
      %v814 = vsel %vm588, %v782, 0
      %v817 = vsel %vm588, %v783, 0
      %v820 = vsel %vm588, %v784, 0
      %v823 = vsel %vm588, %v785, 0
      %v826 = vsel %vm588, %v786, 0
      %v829 = vsel %vm588, %v787, 0
      %v832 = vsel %vm588, %v788, 0
      %v835 = vsel %vm588, %v789, 0
      %v838 = vsel %vm588, %v790, 0
      %v841 = vsel %vm588, %v791, 0
      %v844 = vsel %vm588, %v792, 0
      %v847 = vsel %vm588, %v793, 0
      %v850 = vsel %vm588, %v794, 0
      %v853 = vsel %vm588, %v795, 0
      %v856 = vsel %vm588, %v796, 0
      %v859 = vsel %vm588, %v797, 0
      %861 = vmatprep.subr.mxu0 0.0
      %862 = vmatpush1.msra.mxu0 %v798
      %863 = vmatprep.subr.mxu0 0.0
      %864 = vmatpush1.msra.mxu0 %v799
      %865 = vmatprep.subr.mxu0 0.0
      %866 = vmatpush1.msra.mxu0 %v800
      %867 = vmatprep.subr.mxu0 0.0
      %868 = vmatpush1.msra.mxu0 %v801
      %869 = vmatprep.subr.mxu0 0.0
      %870 = vmatpush1.msra.mxu0 %v802
      %871 = vmatprep.subr.mxu0 0.0
      %872 = vmatpush1.msra.mxu0 %v803
      %873 = vmatprep.subr.mxu0 0.0
      %874 = vmatpush1.msra.mxu0 %v804
      %875 = vmatprep.subr.mxu0 0.0
      %876 = vmatpush1.msra.mxu0 %v805
      %877 = vmatprep.subr.mxu0 0.0
      %878 = vmatpush1.msra.mxu0 0.0
      %879 = vmatprep.subr.mxu0 0.0
      %880 = vmatpush1.msra.mxu0 0.0
      %881 = vmatprep.subr.mxu0 0.0
      %882 = vmatpush1.msra.mxu0 0.0
      %883 = vmatprep.subr.mxu0 0.0
      %884 = vmatpush1.msra.mxu0 0.0
      %885 = vmatprep.subr.mxu0 0.0
      %886 = vmatpush1.msra.mxu0 0.0
      %887 = vmatprep.subr.mxu0 0.0
      %888 = vmatpush1.msra.mxu0 0.0
      %889 = vmatprep.subr.mxu0 0.0
      %890 = vmatpush1.msra.mxu0 0.0
      %891 = vmatprep.subr.mxu0 0.0
      %892 = vmatpush1.msra.mxu0 0.0
      %893 = vmatprep.subr.mxu0 0.0
      %894 = vmatpush1.msra.mxu0 0.0
      %895 = vmatprep.subr.mxu0 0.0
      %896 = vmatpush1.msra.mxu0 0.0
      %897 = vmatprep.subr.mxu0 0.0
      %898 = vmatpush1.msra.mxu0 0.0
      %899 = vmatprep.subr.mxu0 0.0
      %900 = vmatpush1.msra.mxu0 0.0
      %901 = vmatprep.subr.mxu0 0.0
      %902 = vmatpush1.msra.mxu0 0.0
      %903 = vmatprep.subr.mxu0 0.0
      %904 = vmatpush1.msra.mxu0 0.0
      %905 = vmatprep.subr.mxu0 0.0
      %906 = vmatpush1.msra.mxu0 0.0
      %907 = vmatprep.subr.mxu0 0.0
      %908 = vmatpush1.msra.mxu0 0.0
      %909 = vmatprep.subr.mxu0 0.0
      %910 = vmatpush1.msra.mxu0 0.0
      %911 = vmatprep.subr.mxu0 0.0
      %912 = vmatpush1.msra.mxu0 0.0
      %913 = vmatprep.subr.mxu0 0.0
      %914 = vmatpush1.msra.mxu0 0.0
      %915 = vmatprep.subr.mxu0 0.0
      %916 = vmatpush1.msra.mxu0 0.0
      %917 = vmatprep.subr.mxu0 0.0
      %918 = vmatpush1.msra.mxu0 0.0
      %919 = vmatprep.subr.mxu0 0.0
      %920 = vmatpush1.msra.mxu0 0.0
      %921 = vmatprep.subr.mxu0 0.0
      %922 = vmatpush1.msra.mxu0 0.0
      %923 = vmatprep.subr.mxu0 0.0
      %924 = vmatpush1.msra.mxu0 0.0
      %925 = vmatprep.mubr.f32.mxu0 0.0
      %926 = vmatmul.mubr.f32.gmra.mrb[0].mxu0 %v814
      %v927 = vpop.f32.mrb[0].mxu0
      %v928 = vadd.f32 %v811, %v927
      %v929 = vpop.f32.mrb[0].mxu0
      %930 = vmatprep.mubr.f32.mxu0 0.0
      %931 = vmatmul.mubr.f32.gmra.mrb[0].mxu0 %v817
      %v932 = vpop.f32.mrb[0].mxu0
      %v933 = vadd.f32 %v811, %v932
      %v934 = vpop.f32.mrb[0].mxu0
      %935 = vmatprep.mubr.f32.mxu0 0.0
      %936 = vmatmul.mubr.f32.gmra.mrb[0].mxu0 %v820
      %v937 = vpop.f32.mrb[0].mxu0
      %v938 = vadd.f32 %v811, %v937
      %v939 = vpop.f32.mrb[0].mxu0
      %940 = vmatprep.mubr.f32.mxu0 0.0
      %941 = vmatmul.mubr.f32.gmra.mrb[0].mxu0 %v823
      %v942 = vpop.f32.mrb[0].mxu0
      %v943 = vadd.f32 %v811, %v942
      %v944 = vpop.f32.mrb[0].mxu0
      %945 = vmatprep.mubr.f32.mxu0 0.0
      %946 = vmatmul.mubr.f32.gmra.mrb[0].mxu0 %v826
      %v947 = vpop.f32.mrb[0].mxu0
      %v948 = vadd.f32 %v811, %v947
      %v949 = vpop.f32.mrb[0].mxu0
      %950 = vmatprep.mubr.f32.mxu0 0.0
      %951 = vmatmul.mubr.f32.gmra.mrb[0].mxu0 %v829
      %v952 = vpop.f32.mrb[0].mxu0
      %v953 = vadd.f32 %v811, %v952
      %v954 = vpop.f32.mrb[0].mxu0
      %955 = vmatprep.mubr.f32.mxu0 0.0
      %956 = vmatmul.mubr.f32.gmra.mrb[0].mxu0 %v832
      %v957 = vpop.f32.mrb[0].mxu0
      %v958 = vadd.f32 %v811, %v957
      %v959 = vpop.f32.mrb[0].mxu0
      %960 = vmatprep.mubr.f32.mxu0 0.0
      %961 = vmatmul.mubr.f32.gmra.mrb[0].mxu0 %v835
      %v962 = vpop.f32.mrb[0].mxu0
      %v963 = vadd.f32 %v811, %v962
      %v964 = vpop.f32.mrb[0].mxu0
      %965 = vmatprep.mubr.f32.mxu0 0.0
      %966 = vmatmul.mubr.f32.gmra.mrb[0].mxu0 %v838
      %v967 = vpop.f32.mrb[0].mxu0
      %v968 = vadd.f32 %v811, %v967
      %v969 = vpop.f32.mrb[0].mxu0
      %970 = vmatprep.mubr.f32.mxu0 0.0
      %971 = vmatmul.mubr.f32.gmra.mrb[0].mxu0 %v841
      %v972 = vpop.f32.mrb[0].mxu0
      %v973 = vadd.f32 %v811, %v972
      %v974 = vpop.f32.mrb[0].mxu0
      %975 = vmatprep.mubr.f32.mxu0 0.0
      %976 = vmatmul.mubr.f32.gmra.mrb[0].mxu0 %v844
      %v977 = vpop.f32.mrb[0].mxu0
      %v978 = vadd.f32 %v811, %v977
      %v979 = vpop.f32.mrb[0].mxu0
      %980 = vmatprep.mubr.f32.mxu0 0.0
      %981 = vmatmul.mubr.f32.gmra.mrb[0].mxu0 %v847
      %v982 = vpop.f32.mrb[0].mxu0
      %v983 = vadd.f32 %v811, %v982
      %v984 = vpop.f32.mrb[0].mxu0
      %985 = vmatprep.mubr.f32.mxu0 0.0
      %986 = vmatmul.mubr.f32.gmra.mrb[0].mxu0 %v850
      %v987 = vpop.f32.mrb[0].mxu0
      %v988 = vadd.f32 %v811, %v987
      %v989 = vpop.f32.mrb[0].mxu0
      %990 = vmatprep.mubr.f32.mxu0 0.0
      %991 = vmatmul.mubr.f32.gmra.mrb[0].mxu0 %v853
      %v992 = vpop.f32.mrb[0].mxu0
      %v993 = vadd.f32 %v811, %v992
      %v994 = vpop.f32.mrb[0].mxu0
      %995 = vmatprep.mubr.f32.mxu0 0.0
      %996 = vmatmul.mubr.f32.gmra.mrb[0].mxu0 %v856
      %v997 = vpop.f32.mrb[0].mxu0
      %v998 = vadd.f32 %v811, %v997
      %v999 = vpop.f32.mrb[0].mxu0
      %1000 = vmatprep.mubr.f32.mxu0 0.0
      %1001 = vmatmul.mubr.f32.gmra.mrb[0].mxu0 %v859
      %v1002 = vpop.f32.mrb[0].mxu0
      %v1003 = vadd.f32 %v811, %v1002
      %v1004 = vpop.f32.mrb[0].mxu0
      %1005 = vdwg.mxu0
      %v1006 = vmax.f32 %v928, 0.0
      %v1007 = vmax.f32 %v933, 0.0
      %v1008 = vmax.f32 %v938, 0.0
      %v1009 = vmax.f32 %v943, 0.0
      %v1010 = vmax.f32 %v948, 0.0
      %v1011 = vmax.f32 %v953, 0.0
      %v1012 = vmax.f32 %v958, 0.0
      %v1013 = vmax.f32 %v963, 0.0
      %v1014 = vmax.f32 %v968, 0.0
      %v1015 = vmax.f32 %v973, 0.0
      %v1016 = vmax.f32 %v978, 0.0
      %v1017 = vmax.f32 %v983, 0.0
      %v1018 = vmax.f32 %v988, 0.0
      %v1019 = vmax.f32 %v993, 0.0
      %v1020 = vmax.f32 %v998, 0.0
      %v1021 = vmax.f32 %v1003, 0.0
      %v1022 = vld [vmem:[%s7] sm:$0xff]
      %v1023 = vld [vmem:[%s7 + $0x8] sm:$0xff]
      %v1024 = vld [vmem:[%s7 + $0x10] sm:$0xff]
      %v1025 = vld [vmem:[%s7 + $0x18] sm:$0xff]
      %v1026 = vld [vmem:[%s7 + $0x20] sm:$0xff]
      %v1027 = vld [vmem:[%s7 + $0x28] sm:$0xff]
      %v1028 = vld [vmem:[%s7 + $0x30] sm:$0xff]
      %v1029 = vld [vmem:[%s7 + $0x38] sm:$0xff]
      %v1030 = vld [vmem:[%s8] sm:$0x1]
      %v1032 = vlaneseq
      %v1033 = vshrl.u32 %v1032, 7
      %v1034 = vsub.s32 0, %v1033
      %v1035 = vrot.slane %v1030, %v1034
      %v1038 = vsel %vm588, %v1006, 0
      %v1041 = vsel %vm588, %v1007, 0
      %v1044 = vsel %vm588, %v1008, 0
      %v1047 = vsel %vm588, %v1009, 0
      %v1050 = vsel %vm588, %v1010, 0
      %v1053 = vsel %vm588, %v1011, 0
      %v1056 = vsel %vm588, %v1012, 0
      %v1059 = vsel %vm588, %v1013, 0
      %v1062 = vsel %vm588, %v1014, 0
      %v1065 = vsel %vm588, %v1015, 0
      %v1068 = vsel %vm588, %v1016, 0
      %v1071 = vsel %vm588, %v1017, 0
      %v1074 = vsel %vm588, %v1018, 0
      %v1077 = vsel %vm588, %v1019, 0
      %v1080 = vsel %vm588, %v1020, 0
      %v1083 = vsel %vm588, %v1021, 0
      %1085 = vmatprep.subr.mxu0 0.0
      %1086 = vmatpush1.msra.mxu0 %v1022
      %1087 = vmatprep.subr.mxu0 0.0
      %1088 = vmatpush1.msra.mxu0 %v1023
      %1089 = vmatprep.subr.mxu0 0.0
      %1090 = vmatpush1.msra.mxu0 %v1024
      %1091 = vmatprep.subr.mxu0 0.0
      %1092 = vmatpush1.msra.mxu0 %v1025
      %1093 = vmatprep.subr.mxu0 0.0
      %1094 = vmatpush1.msra.mxu0 %v1026
      %1095 = vmatprep.subr.mxu0 0.0
      %1096 = vmatpush1.msra.mxu0 %v1027
      %1097 = vmatprep.subr.mxu0 0.0
      %1098 = vmatpush1.msra.mxu0 %v1028
      %1099 = vmatprep.subr.mxu0 0.0
      %1100 = vmatpush1.msra.mxu0 %v1029
      %1101 = vmatprep.subr.mxu0 0.0
      %1102 = vmatpush1.msra.mxu0 0.0
      %1103 = vmatprep.subr.mxu0 0.0
      %1104 = vmatpush1.msra.mxu0 0.0
      %1105 = vmatprep.subr.mxu0 0.0
      %1106 = vmatpush1.msra.mxu0 0.0
      %1107 = vmatprep.subr.mxu0 0.0
      %1108 = vmatpush1.msra.mxu0 0.0
      %1109 = vmatprep.subr.mxu0 0.0
      %1110 = vmatpush1.msra.mxu0 0.0
      %1111 = vmatprep.subr.mxu0 0.0
      %1112 = vmatpush1.msra.mxu0 0.0
      %1113 = vmatprep.subr.mxu0 0.0
      %1114 = vmatpush1.msra.mxu0 0.0
      %1115 = vmatprep.subr.mxu0 0.0
      %1116 = vmatpush1.msra.mxu0 0.0
      %1117 = vmatprep.subr.mxu0 0.0
      %1118 = vmatpush1.msra.mxu0 0.0
      %1119 = vmatprep.subr.mxu0 0.0
      %1120 = vmatpush1.msra.mxu0 0.0
      %1121 = vmatprep.subr.mxu0 0.0
      %1122 = vmatpush1.msra.mxu0 0.0
      %1123 = vmatprep.subr.mxu0 0.0
      %1124 = vmatpush1.msra.mxu0 0.0
      %1125 = vmatprep.subr.mxu0 0.0
      %1126 = vmatpush1.msra.mxu0 0.0
      %1127 = vmatprep.subr.mxu0 0.0
      %1128 = vmatpush1.msra.mxu0 0.0
      %1129 = vmatprep.subr.mxu0 0.0
      %1130 = vmatpush1.msra.mxu0 0.0
      %1131 = vmatprep.subr.mxu0 0.0
      %1132 = vmatpush1.msra.mxu0 0.0
      %1133 = vmatprep.subr.mxu0 0.0
      %1134 = vmatpush1.msra.mxu0 0.0
      %1135 = vmatprep.subr.mxu0 0.0
      %1136 = vmatpush1.msra.mxu0 0.0
      %1137 = vmatprep.subr.mxu0 0.0
      %1138 = vmatpush1.msra.mxu0 0.0
      %1139 = vmatprep.subr.mxu0 0.0
      %1140 = vmatpush1.msra.mxu0 0.0
      %1141 = vmatprep.subr.mxu0 0.0
      %1142 = vmatpush1.msra.mxu0 0.0
      %1143 = vmatprep.subr.mxu0 0.0
      %1144 = vmatpush1.msra.mxu0 0.0
      %1145 = vmatprep.subr.mxu0 0.0
      %1146 = vmatpush1.msra.mxu0 0.0
      %1147 = vmatprep.subr.mxu0 0.0
      %1148 = vmatpush1.msra.mxu0 0.0
      %1149 = vmatprep.mubr.f32.mxu0 0.0
      %1150 = vmatmul.mubr.f32.gmra.mrb[0].mxu0 %v1038
      %v1151 = vpop.f32.mrb[0].mxu0
      %v1152 = vadd.f32 %v1035, %v1151
      %v1153 = vpop.f32.mrb[0].mxu0
      %1154 = vmatprep.mubr.f32.mxu0 0.0
      %1155 = vmatmul.mubr.f32.gmra.mrb[0].mxu0 %v1041
      %v1156 = vpop.f32.mrb[0].mxu0
      %v1157 = vadd.f32 %v1035, %v1156
      %v1158 = vpop.f32.mrb[0].mxu0
      %1159 = vmatprep.mubr.f32.mxu0 0.0
      %1160 = vmatmul.mubr.f32.gmra.mrb[0].mxu0 %v1044
      %v1161 = vpop.f32.mrb[0].mxu0
      %v1162 = vadd.f32 %v1035, %v1161
      %v1163 = vpop.f32.mrb[0].mxu0
      %1164 = vmatprep.mubr.f32.mxu0 0.0
      %1165 = vmatmul.mubr.f32.gmra.mrb[0].mxu0 %v1047
      %v1166 = vpop.f32.mrb[0].mxu0
      %v1167 = vadd.f32 %v1035, %v1166
      %v1168 = vpop.f32.mrb[0].mxu0
      %1169 = vmatprep.mubr.f32.mxu0 0.0
      %1170 = vmatmul.mubr.f32.gmra.mrb[0].mxu0 %v1050
      %v1171 = vpop.f32.mrb[0].mxu0
      %v1172 = vadd.f32 %v1035, %v1171
      %v1173 = vpop.f32.mrb[0].mxu0
      %1174 = vmatprep.mubr.f32.mxu0 0.0
      %1175 = vmatmul.mubr.f32.gmra.mrb[0].mxu0 %v1053
      %v1176 = vpop.f32.mrb[0].mxu0
      %v1177 = vadd.f32 %v1035, %v1176
      %v1178 = vpop.f32.mrb[0].mxu0
      %1179 = vmatprep.mubr.f32.mxu0 0.0
      %1180 = vmatmul.mubr.f32.gmra.mrb[0].mxu0 %v1056
      %v1181 = vpop.f32.mrb[0].mxu0
      %v1182 = vadd.f32 %v1035, %v1181
      %v1183 = vpop.f32.mrb[0].mxu0
      %1184 = vmatprep.mubr.f32.mxu0 0.0
      %1185 = vmatmul.mubr.f32.gmra.mrb[0].mxu0 %v1059
      %v1186 = vpop.f32.mrb[0].mxu0
      %v1187 = vadd.f32 %v1035, %v1186
      %v1188 = vpop.f32.mrb[0].mxu0
      %1189 = vmatprep.mubr.f32.mxu0 0.0
      %1190 = vmatmul.mubr.f32.gmra.mrb[0].mxu0 %v1062
      %v1191 = vpop.f32.mrb[0].mxu0
      %v1192 = vadd.f32 %v1035, %v1191
      %v1193 = vpop.f32.mrb[0].mxu0
      %1194 = vmatprep.mubr.f32.mxu0 0.0
      %1195 = vmatmul.mubr.f32.gmra.mrb[0].mxu0 %v1065
      %v1196 = vpop.f32.mrb[0].mxu0
      %v1197 = vadd.f32 %v1035, %v1196
      %v1198 = vpop.f32.mrb[0].mxu0
      %1199 = vmatprep.mubr.f32.mxu0 0.0
      %1200 = vmatmul.mubr.f32.gmra.mrb[0].mxu0 %v1068
      %v1201 = vpop.f32.mrb[0].mxu0
      %v1202 = vadd.f32 %v1035, %v1201
      %v1203 = vpop.f32.mrb[0].mxu0
      %1204 = vmatprep.mubr.f32.mxu0 0.0
      %1205 = vmatmul.mubr.f32.gmra.mrb[0].mxu0 %v1071
      %v1206 = vpop.f32.mrb[0].mxu0
      %v1207 = vadd.f32 %v1035, %v1206
      %v1208 = vpop.f32.mrb[0].mxu0
      %1209 = vmatprep.mubr.f32.mxu0 0.0
      %1210 = vmatmul.mubr.f32.gmra.mrb[0].mxu0 %v1074
      %v1211 = vpop.f32.mrb[0].mxu0
      %v1212 = vadd.f32 %v1035, %v1211
      %v1213 = vpop.f32.mrb[0].mxu0
      %1214 = vmatprep.mubr.f32.mxu0 0.0
      %1215 = vmatmul.mubr.f32.gmra.mrb[0].mxu0 %v1077
      %v1216 = vpop.f32.mrb[0].mxu0
      %v1217 = vadd.f32 %v1035, %v1216
      %v1218 = vpop.f32.mrb[0].mxu0
      %1219 = vmatprep.mubr.f32.mxu0 0.0
      %1220 = vmatmul.mubr.f32.gmra.mrb[0].mxu0 %v1080
      %v1221 = vpop.f32.mrb[0].mxu0
      %v1222 = vadd.f32 %v1035, %v1221
      %v1223 = vpop.f32.mrb[0].mxu0
      %1224 = vmatprep.mubr.f32.mxu0 0.0
      %1225 = vmatmul.mubr.f32.gmra.mrb[0].mxu0 %v1083
      %v1226 = vpop.f32.mrb[0].mxu0
      %v1227 = vadd.f32 %v1035, %v1226
      %v1228 = vpop.f32.mrb[0].mxu0
      %1229 = vdwg.mxu0
      %v1230 = vsub.f32 0.0, %v1152
      %v1231 = vsub.f32 0.0, %v1157
      %v1232 = vsub.f32 0.0, %v1162
      %v1233 = vsub.f32 0.0, %v1167
      %v1234 = vsub.f32 0.0, %v1172
      %v1235 = vsub.f32 0.0, %v1177
      %v1236 = vsub.f32 0.0, %v1182
      %v1237 = vsub.f32 0.0, %v1187
      %v1238 = vsub.f32 0.0, %v1192
      %v1239 = vsub.f32 0.0, %v1197
      %v1240 = vsub.f32 0.0, %v1202
      %v1241 = vsub.f32 0.0, %v1207
      %v1242 = vsub.f32 0.0, %v1212
      %v1243 = vsub.f32 0.0, %v1217
      %v1244 = vsub.f32 0.0, %v1222
      %v1245 = vsub.f32 0.0, %v1227
      %v1246 = vmul.f32 %v1230, 1.442695
      %v1247 = vpow.pop %v1246
      %v1248 = vmul.f32 %v1231, 1.442695
      %v1249 = vpow.pop %v1248
      %v1250 = vmul.f32 %v1232, 1.442695
      %v1251 = vpow.pop %v1250
      %v1252 = vmul.f32 %v1233, 1.442695
      %v1253 = vpow.pop %v1252
      %v1254 = vmul.f32 %v1234, 1.442695
      %v1255 = vpow.pop %v1254
      %v1256 = vmul.f32 %v1235, 1.442695
      %v1257 = vpow.pop %v1256
      %v1258 = vmul.f32 %v1236, 1.442695
      %v1259 = vpow.pop %v1258
      %v1260 = vmul.f32 %v1237, 1.442695
      %v1261 = vpow.pop %v1260
      %v1262 = vmul.f32 %v1238, 1.442695
      %v1263 = vpow.pop %v1262
      %v1264 = vmul.f32 %v1239, 1.442695
      %v1265 = vpow.pop %v1264
      %v1266 = vmul.f32 %v1240, 1.442695
      %v1267 = vpow.pop %v1266
      %v1268 = vmul.f32 %v1241, 1.442695
      %v1269 = vpow.pop %v1268
      %v1270 = vmul.f32 %v1242, 1.442695
      %v1271 = vpow.pop %v1270
      %v1272 = vmul.f32 %v1243, 1.442695
      %v1273 = vpow.pop %v1272
      %v1274 = vmul.f32 %v1244, 1.442695
      %v1275 = vpow.pop %v1274
      %v1276 = vmul.f32 %v1245, 1.442695
      %v1277 = vpow.pop %v1276
      %v1278 = vadd.f32 %v1247, 1.0
      %v1279 = vadd.f32 %v1249, 1.0
      %v1280 = vadd.f32 %v1251, 1.0
      %v1281 = vadd.f32 %v1253, 1.0
      %v1282 = vadd.f32 %v1255, 1.0
      %v1283 = vadd.f32 %v1257, 1.0
      %v1284 = vadd.f32 %v1259, 1.0
      %v1285 = vadd.f32 %v1261, 1.0
      %v1286 = vadd.f32 %v1263, 1.0
      %v1287 = vadd.f32 %v1265, 1.0
      %v1288 = vadd.f32 %v1267, 1.0
      %v1289 = vadd.f32 %v1269, 1.0
      %v1290 = vadd.f32 %v1271, 1.0
      %v1291 = vadd.f32 %v1273, 1.0
      %v1292 = vadd.f32 %v1275, 1.0
      %v1293 = vadd.f32 %v1277, 1.0
      %v1294 = vrcp.pop %v1278
      %v1295 = vrcp.pop %v1279
      %v1296 = vrcp.pop %v1280
      %v1297 = vrcp.pop %v1281
      %v1298 = vrcp.pop %v1282
      %v1299 = vrcp.pop %v1283
      %v1300 = vrcp.pop %v1284
      %v1301 = vrcp.pop %v1285
      %v1302 = vrcp.pop %v1286
      %v1303 = vrcp.pop %v1287
      %v1304 = vrcp.pop %v1288
      %v1305 = vrcp.pop %v1289
      %v1306 = vrcp.pop %v1290
      %v1307 = vrcp.pop %v1291
      %v1308 = vrcp.pop %v1292
      %v1309 = vrcp.pop %v1293
      %1310 = vst [vmem:[%s334] sm:$0xff] %v1294
      %1311 = vst [vmem:[%s334 + $0x8] sm:$0xff] %v1295
      %1312 = vst [vmem:[%s334 + $0x10] sm:$0xff] %v1296
      %1313 = vst [vmem:[%s334 + $0x18] sm:$0xff] %v1297
      %1314 = vst [vmem:[%s334 + $0x20] sm:$0xff] %v1298
      %1315 = vst [vmem:[%s334 + $0x28] sm:$0xff] %v1299
      %1316 = vst [vmem:[%s334 + $0x30] sm:$0xff] %v1300
      %1317 = vst [vmem:[%s334 + $0x38] sm:$0xff] %v1301
      %1318 = vst [vmem:[%s334 + $0x40] sm:$0xff] %v1302
      %1319 = vst [vmem:[%s334 + $0x48] sm:$0xff] %v1303
      %1320 = vst [vmem:[%s334 + $0x50] sm:$0xff] %v1304
      %1321 = vst [vmem:[%s334 + $0x58] sm:$0xff] %v1305
      %1322 = vst [vmem:[%s334 + $0x60] sm:$0xff] %v1306
      %1323 = vst [vmem:[%s334 + $0x68] sm:$0xff] %v1307
      %1324 = vst [vmem:[%s334 + $0x70] sm:$0xff] %v1308
      %1325 = vst [vmem:[%s334 + $0x78] sm:$0xff] %v1309
      %s1326 = smul.u32 16, %s20
      %p1327 = scmp.lt.s32.totalorder %s1326, 31
      %s1328 = scalar_select %p1327, %s1326, 31
      %s1329 = smul.addr %s1328, 8
      %s1330 = scalar_lea.vmem %s9, %s1329
      // Predicated region
      $region57: #{mlp_forward.1} parent=55 // pred_check
        %p1331 = pneg %p232
      $region58: #{mlp_forward.1} parent=55 // pred_check_branch
        %1333 = sbr.rel (%p1331) target = $region60
      $region59: #{mlp_forward.1} parent=55 // pred_region
        %s1334 = smul.u32 16, %s20
      $region60: #{mlp_forward.1} parent=55 // pred_fallthru
        _
    $region56: #{mlp_forward.1} parent=5 // pred_fallthru
      _
    %p1335 = scmp.le.s32.totalorder 2, %s15
    // Predicated region
    $region61: #{mlp_forward.1} parent=5 // pred_check
      %p1336 = pneg %p1335
    $region62: #{mlp_forward.1} parent=5 // pred_check_branch
      %1338 = sbr.rel (%p1336) target = $region64
    $region63: #{mlp_forward.1} parent=5 // pred_region
      %s1339 = ssub.s32 %s15, 2
      // Predicated region
      $region65: #{mlp_forward.1} parent=63 // pred_check
        %p1340 = pneg %p238
      $region66: #{mlp_forward.1} parent=63 // pred_check_branch
        %1342 = sbr.rel (%p1340) target = $region68
      $region67: #{mlp_forward.1} parent=63 // pred_region
        %s1343 = smul.u32 16, %s21
        %p1344 = scmp.lt.s32.totalorder %s1343, 31
        %s1345 = scalar_select %p1344, %s1343, 31
        %s1346 = smul.addr %s1345, 8
        %s1347 = scalar_lea.vmem %s9, %s1346
      $region68: #{mlp_forward.1} parent=63 // pred_fallthru
        _
    $region64: #{mlp_forward.1} parent=5 // pred_fallthru
      _
  $region6: #{mlp_forward.1} parent=0 // loop_footer
    %s19 = sadd.s32 1, %s15
  $region7: #{mlp_forward.1} parent=0 // loop_footer_branch
    %14 = sbr.rel target = $region3
  $region8: #{mlp_forward.1} parent=0 // loop_exit
    _

</llo_original>
